<compile_context>
chip_gen: v6e
topology: v6e:2x2x1
jax: 0.10.0
libtpu: 0.0.40
codegen_flags: <defaults>
</compile_context>

<pallas_src>
import jax
import jax.numpy as jnp
from jax import lax
from jax.experimental import pallas as pl
from jax.experimental.pallas import tpu as pltpu


def _round_up(x, m):
    return ((x + m - 1) // m) * m


# ----------------------------- fused Pallas kernel ----------------------------

def _fused_classifier_kernel(x_ref, wc_ref, bc_ref, wf_ref, bf_ref, out_ref,
                             pooled_ref):
    """conv3x3 (as im2col dot) + ReLU + GAP + Linear + Sigmoid for Bt images.

    x_ref     : (Bt, H*W, Kpad)  bf16  lane-dense im2col patches (tap-major cols)
    wc_ref    : (Kpad, Fpad)     bf16  conv weight (rows match patch columns)
    bc_ref    : (1, Fpad)        f32   conv bias
    wf_ref    : (Fpad, Opad)     bf16  FC weight
    bf_ref    : (1, Opad)        f32   FC bias
    out_ref   : (Bt, Opad)       f32   sigmoid probabilities (padded classes)
    pooled_ref: (Bt, Fpad)       f32   VMEM scratch: per-image GAP result
    """
    bt, hw, _ = x_ref.shape
    inv_hw = 1.0 / hw

    # Load weights once per grid step; reused across the Bt images.
    wc = wc_ref[...]                                   # (Kpad, Fpad) bf16
    bc = bc_ref[...]                                   # (1, Fpad)    f32

    # One image (= one H*W-row chunk) per iteration keeps the live f32
    # accumulator bounded to a single feature block while giving the MXU
    # M = H*W (>= 256) rows per dot.  Non-unrolled scf.for bounds live ranges.
    def per_image(b, carry):
        patches = x_ref[b]                             # (H*W, Kpad) bf16, no f32 round trip
        acc = jnp.dot(patches, wc, preferred_element_type=jnp.float32)
        feat = jnp.maximum(acc + bc, 0.0)              # f32 bias + ReLU
        pooled_ref[pl.ds(b, 1), :] = (
            jnp.sum(feat, axis=0, keepdims=True) * inv_hw)   # incremental GAP row
        return carry

    lax.fori_loop(0, bt, per_image, 0)

    # FC head on the whole batch tile: (Bt, Fpad) x (Fpad, Opad), then sigmoid.
    logits = jnp.dot(pooled_ref[...].astype(jnp.bfloat16), wf_ref[...],
                     preferred_element_type=jnp.float32) + bf_ref[...]
    out_ref[...] = 1.0 / (1.0 + jnp.exp(-logits))      # exact divide -> in [0, 1]


# ------------------------------ wrapper ---------------------------------------

def classifier_forward(x_nchw, params, *, batch_tile=8):
    """Forward pass matching Classifier.forward: x -> backbone -> Linear -> Sigmoid."""
    conv_w = params["conv_w"]          # (9*Cin, F), rows ordered (ky, kx, cin)
    conv_b = params["conv_b"]          # (F,)
    fc_w = params["fc_w"]              # (F, n_class)
    fc_b = params["fc_b"]              # (n_class,)

    B, Cin, H, W = x_nchw.shape
    F = conv_w.shape[1]
    n_class = fc_w.shape[1]
    HW = H * W
    K = 9 * Cin

    kpad = _round_up(max(K, 128), 128)        # lane-dense conv contraction dim
    fpad = _round_up(max(F, 128), 128)        # lane-dense feature width
    opad = _round_up(max(n_class, 128), 128)  # lane-dense class width
    Bt = batch_tile                            # images per grid step (sublane-aligned)
    B_pad = _round_up(B, Bt)

    # NCHW -> NHWC, zero-pad batch to B_pad and spatial by 1 (Conv2d padding=1).
    x = jnp.transpose(x_nchw, (0, 2, 3, 1))
    xp = jnp.pad(x, ((0, B_pad - B), (1, 1), (1, 1), (0, 0)))

    # Lane-dense im2col: columns are tap-major (ky, kx, cin), matching conv_w rows.
    cols = [xp[:, dy:dy + H, dx:dx + W, :] for dy in range(3) for dx in range(3)]
    patches = jnp.concatenate(cols, axis=-1).reshape(B_pad, HW, K)
    patches = jnp.pad(patches, ((0, 0), (0, 0), (0, kpad - K))).astype(jnp.bfloat16)

    wc = jnp.pad(conv_w, ((0, kpad - K), (0, fpad - F))).astype(jnp.bfloat16)
    bc = jnp.pad(conv_b, (0, fpad - F)).reshape(1, fpad).astype(jnp.float32)
    wf = jnp.pad(fc_w, ((0, fpad - F), (0, opad - n_class))).astype(jnp.bfloat16)
    bf = jnp.pad(fc_b, (0, opad - n_class)).reshape(1, opad).astype(jnp.float32)

    grid = (B_pad // Bt,)

    flops = B_pad * (2 * HW * kpad * fpad) + 2 * B_pad * fpad * opad
    bytes_accessed = (patches.size * 2 + wc.size * 2 + wf.size * 2
                      + bc.size * 4 + bf.size * 4 + B_pad * opad * 4)

    out = pl.pallas_call(
        _fused_classifier_kernel,
        out_shape=jax.ShapeDtypeStruct((B_pad, opad), jnp.float32),
        grid=grid,
        in_specs=[
            pl.BlockSpec((Bt, HW, kpad), lambda g: (g, 0, 0)),
            pl.BlockSpec((kpad, fpad), lambda g: (0, 0)),
            pl.BlockSpec((1, fpad), lambda g: (0, 0)),
            pl.BlockSpec((fpad, opad), lambda g: (0, 0)),
            pl.BlockSpec((1, opad), lambda g: (0, 0)),
        ],
        out_specs=pl.BlockSpec((Bt, opad), lambda g: (g, 0)),
        scratch_shapes=[pltpu.VMEM((Bt, fpad), jnp.float32)],
        compiler_params=pltpu.CompilerParams(
            dimension_semantics=("parallel",),   # batch tiles independent (v7x 2 TCs)
            vmem_limit_bytes=32 * 1024 * 1024,   # ~1.2 MiB needed; << 64 MiB v7x VMEM
        ),
        cost_estimate=pl.CostEstimate(
            flops=flops,
            transcendentals=B_pad * opad,
            bytes_accessed=bytes_accessed,
        ),
    )(patches, wc, bc, wf, bf)

    return out[:B, :n_class]                     # (B, n_class) sigmoid probs


def init_params(key, c_in, n_features, n_class):
    k1, k2, k3, k4 = jax.random.split(key, 4)
    conv_fan_in = 9 * c_in
    return {
        # rows ordered (ky, kx, cin) — see weight-import note at top of file
        "conv_w": jax.random.normal(k1, (9 * c_in, n_features), jnp.float32)
                  * (1.0 / jnp.sqrt(conv_fan_in)),
        "conv_b": jax.random.normal(k2, (n_features,), jnp.float32) * 0.01,
        "fc_w":   jax.random.normal(k3, (n_features, n_class), jnp.float32)
                  * (1.0 / jnp.sqrt(n_features)),
        "fc_b":   jax.random.normal(k4, (n_class,), jnp.float32) * 0.01,
    }


if __name__ == "__main__":
    # B=16 with Bt=8 -> grid=(2,): both v7x TensorCores get a batch tile.
    B, C_IN, H, W = 16, 4, 16, 16
    N_FEATURES, N_CLASS = 32, 5

    key = jax.random.PRNGKey(0)
    kx, kp = jax.random.split(key)
    x = jax.random.normal(kx, (B, C_IN, H, W), jnp.float32)   # NCHW like PyTorch
    params = init_params(kp, C_IN, N_FEATURES, N_CLASS)

    fwd = jax.jit(classifier_forward)
    out = jax.block_until_ready(fwd(x, params))

    assert out.shape == (B, N_CLASS), out.shape
    assert bool(jnp.all((out >= 0.0) & (out <= 1.0))), "sigmoid output out of range"
    print("KERNEL_OK")
</pallas_src>

<mosaic_0001>
module attributes {stable_mosaic.version = 11 : i64} {
  func.func @_fused_classifier_kernel(%arg0: i32, %arg1: memref<8x256x128xbf16, #tpu.memory_space<vmem>>, %arg2: memref<128x128xbf16, #tpu.memory_space<vmem>>, %arg3: memref<1x128xf32, #tpu.memory_space<vmem>>, %arg4: memref<128x128xbf16, #tpu.memory_space<vmem>>, %arg5: memref<1x128xf32, #tpu.memory_space<vmem>>, %arg6: memref<8x128xf32, #tpu.memory_space<vmem>>, %arg7: memref<8x128xf32, #tpu.memory_space<vmem>>) attributes {dimension_semantics = [#tpu.dimension_semantics<parallel>], iteration_bounds = array<i64: 2>, scalar_prefetch = 0 : i64, scratch_operands = 1 : i64, tpu.core_type = #tpu.core_type<tc>, window_params = [{transform_indices = @transform_0, window_bounds = array<i64: 8, 256, 128>}, {pipeline_mode = #tpu.pipeline_mode<synchronous>, transform_indices = @transform_1, window_bounds = array<i64: 128, 128>}, {pipeline_mode = #tpu.pipeline_mode<synchronous>, transform_indices = @transform_2, window_bounds = array<i64: 1, 128>}, {pipeline_mode = #tpu.pipeline_mode<synchronous>, transform_indices = @transform_3, window_bounds = array<i64: 128, 128>}, {pipeline_mode = #tpu.pipeline_mode<synchronous>, transform_indices = @transform_4, window_bounds = array<i64: 1, 128>}, {transform_indices = @transform_5, window_bounds = array<i64: 8, 128>}]} {
    %c0 = arith.constant 0 : index
    %c0_0 = arith.constant 0 : index
    %0 = vector.load %arg2[%c0, %c0_0] : memref<128x128xbf16, #tpu.memory_space<vmem>>, vector<128x128xbf16>
    %c0_1 = arith.constant 0 : index
    %c0_2 = arith.constant 0 : index
    %1 = vector.load %arg3[%c0_1, %c0_2] : memref<1x128xf32, #tpu.memory_space<vmem>>, vector<1x128xf32>
    %c0_i32 = arith.constant 0 : i32
    %c8_i32 = arith.constant 8 : i32
    %2 = arith.addi %c0_i32, %c8_i32 : i32
    %c1_i32 = arith.constant 1 : i32
    scf.for %arg8 = %c0_i32 to %2 step %c1_i32  : i32 {
      %18 = arith.index_cast %arg8 : i32 to index
      %c0_15 = arith.constant 0 : index
      %c0_16 = arith.constant 0 : index
      %19 = vector.load %arg1[%18, %c0_15, %c0_16] : memref<8x256x128xbf16, #tpu.memory_space<vmem>>, vector<1x256x128xbf16>
      %20 = vector.shape_cast %19 : vector<1x256x128xbf16> to vector<256x128xbf16>
      %cst_17 = arith.constant dense<0.000000e+00> : vector<256x128xf32>
      %21 = tpu.matmul %20, %0, %cst_17 {dimension_numbers = #tpu.dot_dimension_numbers<[1], [0], [0], [1], [0, 0, 1, 1], [], []>} : vector<256x128xbf16>, vector<128x128xbf16>, vector<256x128xf32> -> vector<256x128xf32>
      %22 = vector.broadcast %1 : vector<1x128xf32> to vector<256x128xf32>
      %23 = arith.addf %21, %22 : vector<256x128xf32>
      %cst_18 = arith.constant 0.000000e+00 : f32
      %24 = vector.broadcast %cst_18 : f32 to vector<256x128xf32>
      %25 = arith.maximumf %23, %24 : vector<256x128xf32>
      %cst_19 = arith.constant dense<0.000000e+00> : vector<128xf32>
      %26 = vector.multi_reduction <add>, %25, %cst_19 [0] : vector<256x128xf32> to vector<128xf32>
      %27 = vector.shape_cast %26 : vector<128xf32> to vector<1x128xf32>
      %cst_20 = arith.constant 3.906250e-03 : f32
      %28 = vector.broadcast %cst_20 : f32 to vector<1x128xf32>
      %29 = arith.mulf %27, %28 : vector<1x128xf32>
      %30 = arith.index_cast %arg8 : i32 to index
      %c0_21 = arith.constant 0 : index
      %31 = vector.load %arg7[%30, %c0_21] : memref<8x128xf32, #tpu.memory_space<vmem>>, vector<1x128xf32>
      tpu.vector_store %arg7[%30, %c0_21], %29 {strides = array<i32>} : memref<8x128xf32, #tpu.memory_space<vmem>>, vector<1x128xf32>,
    }
    %c8_i32_3 = arith.constant 8 : i32
    %c0_4 = arith.constant 0 : index
    %c0_5 = arith.constant 0 : index
    %3 = vector.load %arg7[%c0_4, %c0_5] : memref<8x128xf32, #tpu.memory_space<vmem>>, vector<8x128xf32>
    %4 = arith.truncf %3 : vector<8x128xf32> to vector<8x128xbf16>
    %c0_6 = arith.constant 0 : index
    %c0_7 = arith.constant 0 : index
    %5 = vector.load %arg4[%c0_6, %c0_7] : memref<128x128xbf16, #tpu.memory_space<vmem>>, vector<128x128xbf16>
    %cst = arith.constant dense<0.000000e+00> : vector<8x128xf32>
    %6 = tpu.matmul %4, %5, %cst {dimension_numbers = #tpu.dot_dimension_numbers<[1], [0], [0], [1], [0, 0, 1, 1], [], []>} : vector<8x128xbf16>, vector<128x128xbf16>, vector<8x128xf32> -> vector<8x128xf32>
    %c0_8 = arith.constant 0 : index
    %c0_9 = arith.constant 0 : index
    %7 = vector.load %arg5[%c0_8, %c0_9] : memref<1x128xf32, #tpu.memory_space<vmem>>, vector<1x128xf32>
    %8 = vector.broadcast %7 : vector<1x128xf32> to vector<8x128xf32>
    %9 = arith.addf %6, %8 : vector<8x128xf32>
    %cst_10 = arith.constant 0.000000e+00 : f32
    %10 = vector.broadcast %cst_10 : f32 to vector<8x128xf32>
    %11 = arith.subf %10, %9 : vector<8x128xf32>
    %12 = math.exp %11 : vector<8x128xf32>
    %cst_11 = arith.constant 1.000000e+00 : f32
    %13 = vector.broadcast %cst_11 : f32 to vector<8x128xf32>
    %14 = arith.addf %13, %12 : vector<8x128xf32>
    %cst_12 = arith.constant 1.000000e+00 : f32
    %15 = vector.broadcast %cst_12 : f32 to vector<8x128xf32>
    %16 = arith.divf %15, %14 : vector<8x128xf32>
    %c0_13 = arith.constant 0 : index
    %c0_14 = arith.constant 0 : index
    %17 = vector.load %arg6[%c0_13, %c0_14] : memref<8x128xf32, #tpu.memory_space<vmem>>, vector<8x128xf32>
    tpu.vector_store %arg6[%c0_13, %c0_14], %16 {strides = array<i32>} : memref<8x128xf32, #tpu.memory_space<vmem>>, vector<8x128xf32>,
    return
  }
  func.func @transform_0(%arg0: i32) -> (i32, i32, i32) {
    %c0_i32 = arith.constant 0 : i32
    %c0_i32_0 = arith.constant 0 : i32
    %c0_i32_1 = arith.constant 0 : i32
    return %arg0, %c0_i32, %c0_i32_0 : i32, i32, i32
  }
  func.func @transform_1(%arg0: i32) -> (i32, i32) {
    %c0_i32 = arith.constant 0 : i32
    %c0_i32_0 = arith.constant 0 : i32
    %c0_i32_1 = arith.constant 0 : i32
    return %c0_i32, %c0_i32_0 : i32, i32
  }
  func.func @transform_2(%arg0: i32) -> (i32, i32) {
    %c0_i32 = arith.constant 0 : i32
    %c0_i32_0 = arith.constant 0 : i32
    %c0_i32_1 = arith.constant 0 : i32
    return %c0_i32, %c0_i32_0 : i32, i32
  }
  func.func @transform_3(%arg0: i32) -> (i32, i32) {
    %c0_i32 = arith.constant 0 : i32
    %c0_i32_0 = arith.constant 0 : i32
    %c0_i32_1 = arith.constant 0 : i32
    return %c0_i32, %c0_i32_0 : i32, i32
  }
  func.func @transform_4(%arg0: i32) -> (i32, i32) {
    %c0_i32 = arith.constant 0 : i32
    %c0_i32_0 = arith.constant 0 : i32
    %c0_i32_1 = arith.constant 0 : i32
    return %c0_i32, %c0_i32_0 : i32, i32
  }
  func.func @transform_5(%arg0: i32) -> (i32, i32) {
    %c0_i32 = arith.constant 0 : i32
    %c0_i32_0 = arith.constant 0 : i32
    return %arg0, %c0_i32 : i32, i32
  }
}

</mosaic_0001>

<llo_original>
// kernel: classifier_forward.1
$region0: #{classifier_forward.1}
  #allocation0 [shape = 'u32[]', space=smem, size = 0x4, offset = 0x4, fixed_abs, tag = 'smem constant byte address 0x4 - core index']
  #allocation1 [shape = 'u32[144,128]{1,0:T(1,128)}', space=vmem, size = 0x12000, scoped, tag = 'internal scratch']
  #allocation2 [shape = 'f32[8,128]{1,0:T(8,128)}', space=vmem, size = 0x1000, scoped, tag = 'scratch operand']
  %s0 = inlined_call_operand.vmem [shape: bf16[16,256,128], index: 0, kind: input, shape index: {}]
  %s1 = inlined_call_operand.vmem [shape: bf16[128,128], index: 1, kind: input, shape index: {}]
  %s2 = inlined_call_operand.vmem [shape: f32[1,128], index: 2, kind: input, shape index: {}]
  %s3 = inlined_call_operand.vmem [shape: bf16[128,128], index: 3, kind: input, shape index: {}]
  %s4 = inlined_call_operand.vmem [shape: f32[1,128], index: 4, kind: input, shape index: {}]
  %s5 = inlined_call_operand.vmem [shape: f32[16,128], index: 5, kind: output, shape index: {}]
  %s6 = sld [smem:[#allocation0]]
  $region60: #{classifier_forward.1} parent=0
    _
  %s8 = ssub.s32 1, %s6
  %s9 = scalar_select 0, %s8, %s6
  loop: start=0, step=1, limit=4
  $region2: #{classifier_forward.1} parent=0 // loop_pre_header
    _
  $region3: #{classifier_forward.1} parent=0 // loop_header
    %s11 = sphi 0, %s15
    %p12 = scmp.ge.s32.totalorder %s11, 4
    %s21 = sphi 0, %s23
    %s24 = sphi 0, %s21
    %s25 = sphi 0, %s24
    %s41 = sphi 0, %s25
    %s45 = sphi 0, %s45
    %s47 = sphi 0, %s45
    %s48 = sphi 0, %s47
    %s62 = sphi 0, %s48
    %s66 = sphi 0, %s66
    %s68 = sphi 0, %s66
    %s69 = sphi 0, %s68
    %s83 = sphi 0, %s69
    %s87 = sphi 0, %s87
    %s89 = sphi 0, %s87
    %s90 = sphi 0, %s89
    %s104 = sphi 0, %s90
    %s108 = sphi 0, %s108
    %s110 = sphi 0, %s108
    %s111 = sphi 0, %s110
    %s125 = sphi 0, %s111
    %s131 = sphi 0, %s133
    %s134 = sphi 0, %s131
    %s135 = sphi 0, %s134
    %s151 = sphi 0, %s135
  $region4: #{classifier_forward.1} parent=0 // loop_header_branch
    %14 = sbr.rel (%p12) target = $region8
  $region5: #{classifier_forward.1} parent=0 // loop_body
    %s16 = ssub.s32 %s11, 1
    %s17 = ssub.s32 %s11, 2
    %s18 = sadd.s32 %s11, 1
    %s19 = ssub.s32 %s11, %s18
    %p20 = scmp.eq.s32.totalorder %s19, 0
    %s22 = sadd.s32 %s21, 1
    %s23 = scalar_select %p20, %s21, %s22
    %p26 = pneg %p20
    %p27 = scmp.eq.s32.totalorder %s11, 1
    %p28 = por %p26, %p27
    %p29 = scmp.ne.s32.totalorder %s21, %s24
    %p30 = scmp.eq.s32.totalorder %s11, 0
    %p31 = por %p29, %p30
    %p32 = scmp.ne.s32.totalorder %s21, %s24
    %p33 = scmp.eq.s32.totalorder %s16, 1
    %p34 = por %p32, %p33
    %p35 = scmp.ne.s32.totalorder %s24, %s25
    %p36 = scmp.eq.s32.totalorder %s16, 0
    %p37 = por %p35, %p36
    %p38 = scmp.ne.s32.totalorder %s24, %s25
    %p39 = scmp.eq.s32.totalorder %s17, 1
    %p40 = por %p38, %p39
    %p42 = scmp.ne.s32.totalorder %s25, %s41
    %p43 = scmp.eq.s32.totalorder %s17, 0
    %p44 = por %p42, %p43
    %s46 = sadd.s32 %s45, 1
    %p49 = scmp.eq.s32.totalorder %s11, 1
    %p50 = scmp.ne.s32.totalorder %s45, %s47
    %p51 = scmp.eq.s32.totalorder %s11, 0
    %p52 = por %p50, %p51
    %p53 = scmp.ne.s32.totalorder %s45, %s47
    %p54 = scmp.eq.s32.totalorder %s16, 1
    %p55 = por %p53, %p54
    %p56 = scmp.ne.s32.totalorder %s47, %s48
    %p57 = scmp.eq.s32.totalorder %s16, 0
    %p58 = por %p56, %p57
    %p59 = scmp.ne.s32.totalorder %s47, %s48
    %p60 = scmp.eq.s32.totalorder %s17, 1
    %p61 = por %p59, %p60
    %p63 = scmp.ne.s32.totalorder %s48, %s62
    %p64 = scmp.eq.s32.totalorder %s17, 0
    %p65 = por %p63, %p64
    %s67 = sadd.s32 %s66, 1
    %p70 = scmp.eq.s32.totalorder %s11, 1
    %p71 = scmp.ne.s32.totalorder %s66, %s68
    %p72 = scmp.eq.s32.totalorder %s11, 0
    %p73 = por %p71, %p72
    %p74 = scmp.ne.s32.totalorder %s66, %s68
    %p75 = scmp.eq.s32.totalorder %s16, 1
    %p76 = por %p74, %p75
    %p77 = scmp.ne.s32.totalorder %s68, %s69
    %p78 = scmp.eq.s32.totalorder %s16, 0
    %p79 = por %p77, %p78
    %p80 = scmp.ne.s32.totalorder %s68, %s69
    %p81 = scmp.eq.s32.totalorder %s17, 1
    %p82 = por %p80, %p81
    %p84 = scmp.ne.s32.totalorder %s69, %s83
    %p85 = scmp.eq.s32.totalorder %s17, 0
    %p86 = por %p84, %p85
    %s88 = sadd.s32 %s87, 1
    %p91 = scmp.eq.s32.totalorder %s11, 1
    %p92 = scmp.ne.s32.totalorder %s87, %s89
    %p93 = scmp.eq.s32.totalorder %s11, 0
    %p94 = por %p92, %p93
    %p95 = scmp.ne.s32.totalorder %s87, %s89
    %p96 = scmp.eq.s32.totalorder %s16, 1
    %p97 = por %p95, %p96
    %p98 = scmp.ne.s32.totalorder %s89, %s90
    %p99 = scmp.eq.s32.totalorder %s16, 0
    %p100 = por %p98, %p99
    %p101 = scmp.ne.s32.totalorder %s89, %s90
    %p102 = scmp.eq.s32.totalorder %s17, 1
    %p103 = por %p101, %p102
    %p105 = scmp.ne.s32.totalorder %s90, %s104
    %p106 = scmp.eq.s32.totalorder %s17, 0
    %p107 = por %p105, %p106
    %s109 = sadd.s32 %s108, 1
    %p112 = scmp.eq.s32.totalorder %s11, 1
    %p113 = scmp.ne.s32.totalorder %s108, %s110
    %p114 = scmp.eq.s32.totalorder %s11, 0
    %p115 = por %p113, %p114
    %p116 = scmp.ne.s32.totalorder %s108, %s110
    %p117 = scmp.eq.s32.totalorder %s16, 1
    %p118 = por %p116, %p117
    %p119 = scmp.ne.s32.totalorder %s110, %s111
    %p120 = scmp.eq.s32.totalorder %s16, 0
    %p121 = por %p119, %p120
    %p122 = scmp.ne.s32.totalorder %s110, %s111
    %p123 = scmp.eq.s32.totalorder %s17, 1
    %p124 = por %p122, %p123
    %p126 = scmp.ne.s32.totalorder %s111, %s125
    %p127 = scmp.eq.s32.totalorder %s17, 0
    %p128 = por %p126, %p127
    %s129 = ssub.s32 %s11, %s18
    %p130 = scmp.eq.s32.totalorder %s129, 0
    %s132 = sadd.s32 %s131, 1
    %s133 = scalar_select %p130, %s131, %s132
    %p136 = pneg %p130
    %p137 = scmp.eq.s32.totalorder %s11, 1
    %p138 = por %p136, %p137
    %p139 = scmp.ne.s32.totalorder %s131, %s134
    %p140 = scmp.eq.s32.totalorder %s11, 0
    %p141 = por %p139, %p140
    %p142 = scmp.ne.s32.totalorder %s131, %s134
    %p143 = scmp.eq.s32.totalorder %s16, 1
    %p144 = por %p142, %p143
    %p145 = scmp.ne.s32.totalorder %s134, %s135
    %p146 = scmp.eq.s32.totalorder %s16, 0
    %p147 = por %p145, %p146
    %p148 = scmp.ne.s32.totalorder %s134, %s135
    %p149 = scmp.eq.s32.totalorder %s17, 1
    %p150 = por %p148, %p149
    %p152 = scmp.ne.s32.totalorder %s135, %s151
    %p153 = scmp.eq.s32.totalorder %s17, 0
    %p154 = por %p152, %p153
    %p155 = scmp.le.s32.totalorder 1, %s11
    %p156 = scmp.lt.s32.totalorder %s11, 3
    %p157 = pnand %p155, %p156
    %p158 = pneg %p157
    // Predicated region
    $region9: #{classifier_forward.1} parent=5 // pred_check
      _
    $region10: #{classifier_forward.1} parent=5 // pred_check_branch
      %160 = sbr.rel (%p157) target = $region12
    $region11: #{classifier_forward.1} parent=5 // pred_region
      %s161 = ssub.s32 %s11, 1
      // Predicated region
      $region13: #{classifier_forward.1} parent=11 // pred_check
        %p162 = pneg %p58
      $region14: #{classifier_forward.1} parent=11 // pred_check_branch
        %164 = sbr.rel (%p162) target = $region16
      $region15: #{classifier_forward.1} parent=11 // pred_region
        _
      $region16: #{classifier_forward.1} parent=11 // pred_fallthru
        _
      // Predicated region
      $region17: #{classifier_forward.1} parent=11 // pred_check
        %p165 = pneg %p79
      $region18: #{classifier_forward.1} parent=11 // pred_check_branch
        %167 = sbr.rel (%p165) target = $region20
      $region19: #{classifier_forward.1} parent=11 // pred_region
        _
      $region20: #{classifier_forward.1} parent=11 // pred_fallthru
        _
      // Predicated region
      $region21: #{classifier_forward.1} parent=11 // pred_check
        %p168 = pneg %p100
      $region22: #{classifier_forward.1} parent=11 // pred_check_branch
        %170 = sbr.rel (%p168) target = $region24
      $region23: #{classifier_forward.1} parent=11 // pred_region
        _
      $region24: #{classifier_forward.1} parent=11 // pred_fallthru
        _
      // Predicated region
      $region25: #{classifier_forward.1} parent=11 // pred_check
        %p171 = pneg %p121
      $region26: #{classifier_forward.1} parent=11 // pred_check_branch
        %173 = sbr.rel (%p171) target = $region28
      $region27: #{classifier_forward.1} parent=11 // pred_region
        _
      $region28: #{classifier_forward.1} parent=11 // pred_fallthru
        _
    $region12: #{classifier_forward.1} parent=5 // pred_fallthru
      _
    %p174 = scmp.lt.s32.totalorder %s11, 2
    // Predicated region
    $region29: #{classifier_forward.1} parent=5 // pred_check
      %p175 = pneg %p174
    $region30: #{classifier_forward.1} parent=5 // pred_check_branch
      %177 = sbr.rel (%p175) target = $region32
    $region31: #{classifier_forward.1} parent=5 // pred_region
      // Predicated region
      $region33: #{classifier_forward.1} parent=31 // pred_check
        %p178 = pneg %p31
      $region34: #{classifier_forward.1} parent=31 // pred_check_branch
        %180 = sbr.rel (%p178) target = $region36
      $region35: #{classifier_forward.1} parent=31 // pred_region
        %s181 = smul.u32 8, %s11
        %p182 = scmp.lt.s32.totalorder %s181, 15
        %s183 = scalar_select %p182, %s181, 15
        %s184 = smul.addr %s183, 32
        %s185 = smul.addr %s184, 4
        %s186 = scalar_lea.vmem %s0, %s185
        %s187 = smul.u32 8, %s11
      $region36: #{classifier_forward.1} parent=31 // pred_fallthru
        _
    $region32: #{classifier_forward.1} parent=5 // pred_fallthru
      _
    %p188 = scmp.le.s32.totalorder 1, %s11
    %p189 = scmp.lt.s32.totalorder %s11, 3
    %p190 = pnand %p188, %p189
    %p191 = pneg %p190
    // Predicated region
    $region37: #{classifier_forward.1} parent=5 // pred_check
      _
    $region38: #{classifier_forward.1} parent=5 // pred_check_branch
      %193 = sbr.rel (%p190) target = $region40
    $region39: #{classifier_forward.1} parent=5 // pred_region
      %s194 = ssub.s32 %s11, 1
      %s195 = smul.u32 8, %s16
      %p196 = scmp.lt.s32.totalorder %s195, 15
      %s197 = scalar_select %p196, %s195, 15
      %s198 = smul.addr %s197, 32
      %s199 = smul.addr %s198, 4
      %s200 = scalar_lea.vmem %s0, %s199
      %p201 = pneg %p37
      %p202 = pneg %p34
      %p203 = pneg %p58
      %p204 = pneg %p55
      %p205 = pneg %p79
      %p206 = pneg %p76
      %p207 = pneg %p100
      %p208 = pneg %p97
      %p209 = pneg %p121
      %p210 = pneg %p118
      %p211 = pneg %p147
      %p212 = pneg %p144
      %p213 = scmp.lt.s32.totalorder %s16, 1
      %s214 = scalar_select %p213, %s16, 1
      %s215 = smul.addr %s214, 8
      %s216 = scalar_lea.vmem %s5, %s215
      %s217 = smul.u32 8, %s16
      %p218 = scmp.lt.s32.totalorder %s217, 15
      %s219 = scalar_select %p218, %s217, 15
      %s220 = smul.addr %s219, 32
      %s221 = smul.addr %s220, 4
      %s222 = scalar_lea.vmem %s0, %s221
      %s223 = smul.u32 8, %s16
      %p224 = scmp.lt.s32.totalorder %s16, 1
      %s225 = scalar_select %p224, %s16, 1
      %s226 = smul.addr %s225, 8
      %s227 = scalar_lea.vmem %s5, %s226
      %v229 = vld [vmem:[%s1] sm:$0xf]
      %v230 = vld [vmem:[%s1 + $0x4] sm:$0xf]
      %v231 = vld [vmem:[%s1 + $0x8] sm:$0xf]
      %v232 = vld [vmem:[%s1 + $0xc] sm:$0xf]
      %v233 = vld [vmem:[%s1 + $0x10] sm:$0xf]
      %v234 = vld [vmem:[%s1 + $0x14] sm:$0xf]
      %v235 = vld [vmem:[%s1 + $0x18] sm:$0xf]
      %v236 = vld [vmem:[%s1 + $0x1c] sm:$0xf]
      %v237 = vld [vmem:[%s1 + $0x20] sm:$0xf]
      %v238 = vld [vmem:[%s1 + $0x24] sm:$0xf]
      %v239 = vld [vmem:[%s1 + $0x28] sm:$0xf]
      %v240 = vld [vmem:[%s1 + $0x2c] sm:$0xf]
      %v241 = vld [vmem:[%s1 + $0x30] sm:$0xf]
      %v242 = vld [vmem:[%s1 + $0x34] sm:$0xf]
      %v243 = vld [vmem:[%s1 + $0x38] sm:$0xf]
      %v244 = vld [vmem:[%s1 + $0x3c] sm:$0xf]
      %v245 = vld [vmem:[%s2] sm:$0x1]
      loop: start=0, step=1, limit=8
      $region41: #{classifier_forward.1} parent=39 // loop_pre_header
        _
      $region42: #{classifier_forward.1} parent=39 // loop_header
        %s247 = sphi 0, %s251
        %p248 = scmp.ge.s32.totalorder %s247, 8
      $region43: #{classifier_forward.1} parent=39 // loop_header_branch
        %250 = sbr.rel (%p248) target = $region47
      $region44: #{classifier_forward.1} parent=39 // loop_body
        %s252 = smul.u32 %s247, 32
        %s253 = smul.addr %s252, 4
        %s254 = scalar_lea.vmem %s222, %s253
        %v255 = vld [vmem:[%s254] sm:$0xf]
        %v256 = vld [vmem:[%s254 + $0x4] sm:$0xf]
        %v257 = vld [vmem:[%s254 + $0x8] sm:$0xf]
        %v258 = vld [vmem:[%s254 + $0xc] sm:$0xf]
        %v259 = vld [vmem:[%s254 + $0x10] sm:$0xf]
        %v260 = vld [vmem:[%s254 + $0x14] sm:$0xf]
        %v261 = vld [vmem:[%s254 + $0x18] sm:$0xf]
        %v262 = vld [vmem:[%s254 + $0x1c] sm:$0xf]
        %v263 = vld [vmem:[%s254 + $0x20] sm:$0xf]
        %v264 = vld [vmem:[%s254 + $0x24] sm:$0xf]
        %v265 = vld [vmem:[%s254 + $0x28] sm:$0xf]
        %v266 = vld [vmem:[%s254 + $0x2c] sm:$0xf]
        %v267 = vld [vmem:[%s254 + $0x30] sm:$0xf]
        %v268 = vld [vmem:[%s254 + $0x34] sm:$0xf]
        %v269 = vld [vmem:[%s254 + $0x38] sm:$0xf]
        %v270 = vld [vmem:[%s254 + $0x3c] sm:$0xf]
        %v271 = vld [vmem:[%s254 + $0x40] sm:$0xf]
        %v272 = vld [vmem:[%s254 + $0x44] sm:$0xf]
        %v273 = vld [vmem:[%s254 + $0x48] sm:$0xf]
        %v274 = vld [vmem:[%s254 + $0x4c] sm:$0xf]
        %v275 = vld [vmem:[%s254 + $0x50] sm:$0xf]
        %v276 = vld [vmem:[%s254 + $0x54] sm:$0xf]
        %v277 = vld [vmem:[%s254 + $0x58] sm:$0xf]
        %v278 = vld [vmem:[%s254 + $0x5c] sm:$0xf]
        %v279 = vld [vmem:[%s254 + $0x60] sm:$0xf]
        %v280 = vld [vmem:[%s254 + $0x64] sm:$0xf]
        %v281 = vld [vmem:[%s254 + $0x68] sm:$0xf]
        %v282 = vld [vmem:[%s254 + $0x6c] sm:$0xf]
        %v283 = vld [vmem:[%s254 + $0x70] sm:$0xf]
        %v284 = vld [vmem:[%s254 + $0x74] sm:$0xf]
        %v285 = vld [vmem:[%s254 + $0x78] sm:$0xf]
        %v286 = vld [vmem:[%s254 + $0x7c] sm:$0xf]
        %v288 = vlaneseq
        %v289 = vshrl.u32 %v288, 7
        %v290 = vsub.s32 0, %v289
        %v291 = vrot.slane %v245, %v290
        %v325 = vunpack.c.l.b16 %v255
        %v326 = vunpack.c.l.b16 %v256
        %v327 = vunpack.c.l.b16 %v257
        %v328 = vunpack.c.l.b16 %v258
        %v329 = vunpack.c.l.b16 %v259
        %v330 = vunpack.c.l.b16 %v260
        %v331 = vunpack.c.l.b16 %v261
        %v332 = vunpack.c.l.b16 %v262
        %v333 = vunpack.c.l.b16 %v263
        %v334 = vunpack.c.l.b16 %v264
        %v335 = vunpack.c.l.b16 %v265
        %v336 = vunpack.c.l.b16 %v266
        %v337 = vunpack.c.l.b16 %v267
        %v338 = vunpack.c.l.b16 %v268
        %v339 = vunpack.c.l.b16 %v269
        %v340 = vunpack.c.l.b16 %v270
        %v341 = vunpack.c.l.b16 %v271
        %v342 = vunpack.c.l.b16 %v272
        %v343 = vunpack.c.l.b16 %v273
        %v344 = vunpack.c.l.b16 %v274
        %v345 = vunpack.c.l.b16 %v275
        %v346 = vunpack.c.l.b16 %v276
        %v347 = vunpack.c.l.b16 %v277
        %v348 = vunpack.c.l.b16 %v278
        %v349 = vunpack.c.l.b16 %v279
        %v350 = vunpack.c.l.b16 %v280
        %v351 = vunpack.c.l.b16 %v281
        %v352 = vunpack.c.l.b16 %v282
        %v353 = vunpack.c.l.b16 %v283
        %v354 = vunpack.c.l.b16 %v284
        %v355 = vunpack.c.l.b16 %v285
        %v356 = vunpack.c.l.b16 %v286
        %v357 = vpack.c.b16 %v326, %v325
        %v358 = vpack.c.b16 %v328, %v327
        %v359 = vpack.c.b16 %v330, %v329
        %v360 = vpack.c.b16 %v332, %v331
        %v361 = vpack.c.b16 %v334, %v333
        %v362 = vpack.c.b16 %v336, %v335
        %v363 = vpack.c.b16 %v338, %v337
        %v364 = vpack.c.b16 %v340, %v339
        %v365 = vpack.c.b16 %v342, %v341
        %v366 = vpack.c.b16 %v344, %v343
        %v367 = vpack.c.b16 %v346, %v345
        %v368 = vpack.c.b16 %v348, %v347
        %v369 = vpack.c.b16 %v350, %v349
        %v370 = vpack.c.b16 %v352, %v351
        %v371 = vpack.c.b16 %v354, %v353
        %v372 = vpack.c.b16 %v356, %v355
        %v405 = vunpack.c.l.b16 %v229
        %v406 = vunpack.c.l.b16 %v230
        %v407 = vunpack.c.l.b16 %v231
        %v408 = vunpack.c.l.b16 %v232
        %v409 = vunpack.c.l.b16 %v233
        %v410 = vunpack.c.l.b16 %v234
        %v411 = vunpack.c.l.b16 %v235
        %v412 = vunpack.c.l.b16 %v236
        %v413 = vunpack.c.l.b16 %v237
        %v414 = vunpack.c.l.b16 %v238
        %v415 = vunpack.c.l.b16 %v239
        %v416 = vunpack.c.l.b16 %v240
        %v417 = vunpack.c.l.b16 %v241
        %v418 = vunpack.c.l.b16 %v242
        %v419 = vunpack.c.l.b16 %v243
        %v420 = vunpack.c.l.b16 %v244
        %v421 = vpack.c.b16 %v406, %v405
        %v422 = vpack.c.b16 %v408, %v407
        %v423 = vpack.c.b16 %v410, %v409
        %v424 = vpack.c.b16 %v412, %v411
        %v425 = vpack.c.b16 %v414, %v413
        %v426 = vpack.c.b16 %v416, %v415
        %v427 = vpack.c.b16 %v418, %v417
        %v428 = vpack.c.b16 %v420, %v419
        %437 = vmatprep.subr.bf16.mxu0 0
        %438 = vmatpush1.bf16.msra.mxu0 %v428
        %439 = vmatprep.subr.bf16.mxu0 0
        %440 = vmatpush1.bf16.msra.mxu0 %v427
        %441 = vmatprep.subr.bf16.mxu0 0
        %442 = vmatpush1.bf16.msra.mxu0 %v426
        %443 = vmatprep.subr.bf16.mxu0 0
        %444 = vmatpush1.bf16.msra.mxu0 %v425
        %445 = vmatprep.subr.bf16.mxu0 0
        %446 = vmatpush1.bf16.msra.mxu0 %v424
        %447 = vmatprep.subr.bf16.mxu0 0
        %448 = vmatpush1.bf16.msra.mxu0 %v423
        %449 = vmatprep.subr.bf16.mxu0 0
        %450 = vmatpush1.bf16.msra.mxu0 %v422
        %451 = vmatprep.subr.bf16.mxu0 0
        %452 = vmatpush1.bf16.msra.mxu0 %v421
        %453 = vmatprep.subr.bf16.mxu0 0
        %454 = vmatpush2.bf16.msra.mxu0 0
        %455 = vmatprep.subr.bf16.mxu0 0
        %456 = vmatpush2.bf16.msra.mxu0 0
        %457 = vmatprep.subr.bf16.mxu0 0
        %458 = vmatpush2.bf16.msra.mxu0 0
        %459 = vmatprep.subr.bf16.mxu0 0
        %460 = vmatpush2.bf16.msra.mxu0 0
        %461 = vmatprep.subr.bf16.mxu0 0
        %462 = vmatpush2.bf16.msra.mxu0 0
        %463 = vmatprep.subr.bf16.mxu0 0
        %464 = vmatpush2.bf16.msra.mxu0 0
        %465 = vmatprep.subr.bf16.mxu0 0
        %466 = vmatpush2.bf16.msra.mxu0 0
        %467 = vmatprep.subr.bf16.mxu0 0
        %468 = vmatpush2.bf16.msra.mxu0 0
        %469 = vmatprep.mubr.bf16.mxu0 0
        %470 = vmatmul.mubr.bf16.gmra.mxu0 %v357
        %v471 = vpop.f32.mrf.mxu0
        %v472 = vadd.f32 %v291, %v471
        %v473 = vpop.f32.mrf.mxu0
        %v474 = vpop.f32.mrf.mxu0
        %v475 = vadd.f32 %v291, %v474
        %v476 = vpop.f32.mrf.mxu0
        %477 = vmatprep.mubr.bf16.mxu0 0
        %478 = vmatmul.mubr.bf16.gmra.mxu0 %v358
        %v479 = vpop.f32.mrf.mxu0
        %v480 = vadd.f32 %v291, %v479
        %v481 = vpop.f32.mrf.mxu0
        %v482 = vpop.f32.mrf.mxu0
        %v483 = vadd.f32 %v291, %v482
        %v484 = vpop.f32.mrf.mxu0
        %485 = vmatprep.mubr.bf16.mxu0 0
        %486 = vmatmul.mubr.bf16.gmra.mxu0 %v359
        %v487 = vpop.f32.mrf.mxu0
        %v488 = vadd.f32 %v291, %v487
        %v489 = vpop.f32.mrf.mxu0
        %v490 = vpop.f32.mrf.mxu0
        %v491 = vadd.f32 %v291, %v490
        %v492 = vpop.f32.mrf.mxu0
        %493 = vmatprep.mubr.bf16.mxu0 0
        %494 = vmatmul.mubr.bf16.gmra.mxu0 %v360
        %v495 = vpop.f32.mrf.mxu0
        %v496 = vadd.f32 %v291, %v495
        %v497 = vpop.f32.mrf.mxu0
        %v498 = vpop.f32.mrf.mxu0
        %v499 = vadd.f32 %v291, %v498
        %v500 = vpop.f32.mrf.mxu0
        %501 = vmatprep.mubr.bf16.mxu0 0
        %502 = vmatmul.mubr.bf16.gmra.mxu0 %v361
        %v503 = vpop.f32.mrf.mxu0
        %v504 = vadd.f32 %v291, %v503
        %v505 = vpop.f32.mrf.mxu0
        %v506 = vpop.f32.mrf.mxu0
        %v507 = vadd.f32 %v291, %v506
        %v508 = vpop.f32.mrf.mxu0
        %509 = vmatprep.mubr.bf16.mxu0 0
        %510 = vmatmul.mubr.bf16.gmra.mxu0 %v362
        %v511 = vpop.f32.mrf.mxu0
        %v512 = vadd.f32 %v291, %v511
        %v513 = vpop.f32.mrf.mxu0
        %v514 = vpop.f32.mrf.mxu0
        %v515 = vadd.f32 %v291, %v514
        %v516 = vpop.f32.mrf.mxu0
        %517 = vmatprep.mubr.bf16.mxu0 0
        %518 = vmatmul.mubr.bf16.gmra.mxu0 %v363
        %v519 = vpop.f32.mrf.mxu0
        %v520 = vadd.f32 %v291, %v519
        %v521 = vpop.f32.mrf.mxu0
        %v522 = vpop.f32.mrf.mxu0
        %v523 = vadd.f32 %v291, %v522
        %v524 = vpop.f32.mrf.mxu0
        %525 = vmatprep.mubr.bf16.mxu0 0
        %526 = vmatmul.mubr.bf16.gmra.mxu0 %v364
        %v527 = vpop.f32.mrf.mxu0
        %v528 = vadd.f32 %v291, %v527
        %v529 = vpop.f32.mrf.mxu0
        %v530 = vpop.f32.mrf.mxu0
        %v531 = vadd.f32 %v291, %v530
        %v532 = vpop.f32.mrf.mxu0
        %533 = vmatprep.mubr.bf16.mxu0 0
        %534 = vmatmul.mubr.bf16.gmra.mxu0 %v365
        %v535 = vpop.f32.mrf.mxu0
        %v536 = vadd.f32 %v291, %v535
        %v537 = vpop.f32.mrf.mxu0
        %v538 = vpop.f32.mrf.mxu0
        %v539 = vadd.f32 %v291, %v538
        %v540 = vpop.f32.mrf.mxu0
        %541 = vmatprep.mubr.bf16.mxu0 0
        %542 = vmatmul.mubr.bf16.gmra.mxu0 %v366
        %v543 = vpop.f32.mrf.mxu0
        %v544 = vadd.f32 %v291, %v543
        %v545 = vpop.f32.mrf.mxu0
        %v546 = vpop.f32.mrf.mxu0
        %v547 = vadd.f32 %v291, %v546
        %v548 = vpop.f32.mrf.mxu0
        %549 = vmatprep.mubr.bf16.mxu0 0
        %550 = vmatmul.mubr.bf16.gmra.mxu0 %v367
        %v551 = vpop.f32.mrf.mxu0
        %v552 = vadd.f32 %v291, %v551
        %v553 = vpop.f32.mrf.mxu0
        %v554 = vpop.f32.mrf.mxu0
        %v555 = vadd.f32 %v291, %v554
        %v556 = vpop.f32.mrf.mxu0
        %557 = vmatprep.mubr.bf16.mxu0 0
        %558 = vmatmul.mubr.bf16.gmra.mxu0 %v368
        %v559 = vpop.f32.mrf.mxu0
        %v560 = vadd.f32 %v291, %v559
        %v561 = vpop.f32.mrf.mxu0
        %v562 = vpop.f32.mrf.mxu0
        %v563 = vadd.f32 %v291, %v562
        %v564 = vpop.f32.mrf.mxu0
        %565 = vmatprep.mubr.bf16.mxu0 0
        %566 = vmatmul.mubr.bf16.gmra.mxu0 %v369
        %v567 = vpop.f32.mrf.mxu0
        %v568 = vadd.f32 %v291, %v567
        %v569 = vpop.f32.mrf.mxu0
        %v570 = vpop.f32.mrf.mxu0
        %v571 = vadd.f32 %v291, %v570
        %v572 = vpop.f32.mrf.mxu0
        %573 = vmatprep.mubr.bf16.mxu0 0
        %574 = vmatmul.mubr.bf16.gmra.mxu0 %v370
        %v575 = vpop.f32.mrf.mxu0
        %v576 = vadd.f32 %v291, %v575
        %v577 = vpop.f32.mrf.mxu0
        %v578 = vpop.f32.mrf.mxu0
        %v579 = vadd.f32 %v291, %v578
        %v580 = vpop.f32.mrf.mxu0
        %581 = vmatprep.mubr.bf16.mxu0 0
        %582 = vmatmul.mubr.bf16.gmra.mxu0 %v371
        %v583 = vpop.f32.mrf.mxu0
        %v584 = vadd.f32 %v291, %v583
        %v585 = vpop.f32.mrf.mxu0
        %v586 = vpop.f32.mrf.mxu0
        %v587 = vadd.f32 %v291, %v586
        %v588 = vpop.f32.mrf.mxu0
        %589 = vmatprep.mubr.bf16.mxu0 0
        %590 = vmatmul.mubr.bf16.gmra.mxu0 %v372
        %v591 = vpop.f32.mrf.mxu0
        %v592 = vadd.f32 %v291, %v591
        %v593 = vpop.f32.mrf.mxu0
        %v594 = vpop.f32.mrf.mxu0
        %v595 = vadd.f32 %v291, %v594
        %v596 = vpop.f32.mrf.mxu0
        %597 = vdwg.mxu0
        %v598 = vmax.f32 %v472, 0.0
        %v599 = vmax.f32 %v475, 0.0
        %v600 = vmax.f32 %v480, 0.0
        %v601 = vmax.f32 %v483, 0.0
        %v602 = vmax.f32 %v488, 0.0
        %v603 = vmax.f32 %v491, 0.0
        %v604 = vmax.f32 %v496, 0.0
        %v605 = vmax.f32 %v499, 0.0
        %v606 = vmax.f32 %v504, 0.0
        %v607 = vmax.f32 %v507, 0.0
        %v608 = vmax.f32 %v512, 0.0
        %v609 = vmax.f32 %v515, 0.0
        %v610 = vmax.f32 %v520, 0.0
        %v611 = vmax.f32 %v523, 0.0
        %v612 = vmax.f32 %v528, 0.0
        %v613 = vmax.f32 %v531, 0.0
        %v614 = vmax.f32 %v536, 0.0
        %v615 = vmax.f32 %v539, 0.0
        %v616 = vmax.f32 %v544, 0.0
        %v617 = vmax.f32 %v547, 0.0
        %v618 = vmax.f32 %v552, 0.0
        %v619 = vmax.f32 %v555, 0.0
        %v620 = vmax.f32 %v560, 0.0
        %v621 = vmax.f32 %v563, 0.0
        %v622 = vmax.f32 %v568, 0.0
        %v623 = vmax.f32 %v571, 0.0
        %v624 = vmax.f32 %v576, 0.0
        %v625 = vmax.f32 %v579, 0.0
        %v626 = vmax.f32 %v584, 0.0
        %v627 = vmax.f32 %v587, 0.0
        %v628 = vmax.f32 %v592, 0.0
        %v629 = vmax.f32 %v595, 0.0
        %v630 = vadd.f32 %v598, %v599
        %v631 = vadd.f32 %v630, %v600
        %v632 = vadd.f32 %v631, %v601
        %v633 = vadd.f32 %v632, %v602
        %v634 = vadd.f32 %v633, %v603
        %v635 = vadd.f32 %v634, %v604
        %v636 = vadd.f32 %v635, %v605
        %v637 = vadd.f32 %v636, %v606
        %v638 = vadd.f32 %v637, %v607
        %v639 = vadd.f32 %v638, %v608
        %v640 = vadd.f32 %v639, %v609
        %v641 = vadd.f32 %v640, %v610
        %v642 = vadd.f32 %v641, %v611
        %v643 = vadd.f32 %v642, %v612
        %v644 = vadd.f32 %v643, %v613
        %v645 = vadd.f32 %v644, %v614
        %v646 = vadd.f32 %v645, %v615
        %v647 = vadd.f32 %v646, %v616
        %v648 = vadd.f32 %v647, %v617
        %v649 = vadd.f32 %v648, %v618
        %v650 = vadd.f32 %v649, %v619
        %v651 = vadd.f32 %v650, %v620
        %v652 = vadd.f32 %v651, %v621
        %v653 = vadd.f32 %v652, %v622
        %v654 = vadd.f32 %v653, %v623
        %v655 = vadd.f32 %v654, %v624
        %v656 = vadd.f32 %v655, %v625
        %v657 = vadd.f32 %v656, %v626
        %v658 = vadd.f32 %v657, %v627
        %v659 = vadd.f32 %v658, %v628
        %v660 = vadd.f32 %v659, %v629
        %v661 = vrot.slane %v660, 4
        %v662 = vadd.f32 %v660, %v661
        %v663 = vrot.slane %v662, 2
        %v664 = vadd.f32 %v662, %v663
        %v665 = vrot.slane %v664, 1
        %v666 = vadd.f32 %v664, %v665
        %v667 = vmul.f32 %v666, 0.00390625
        %s668 = scalar_lea.vmem [#allocation2], %s247
        %669 = vst [vmem:[%s668] sm:$0x1] %v667
      $region45: #{classifier_forward.1} parent=39 // loop_footer
        %s251 = sadd.s32 1, %s247
      $region46: #{classifier_forward.1} parent=39 // loop_footer_branch
        %246 = sbr.rel target = $region42
      $region47: #{classifier_forward.1} parent=39 // loop_exit
        _
      %v670 = vld [vmem:[#allocation2] sm:$0xff]
      %v671 = vpack.c.bf16 %v670, %v670
      %v672 = vld [vmem:[%s3] sm:$0xf]
      %v673 = vld [vmem:[%s3 + $0x4] sm:$0xf]
      %v674 = vld [vmem:[%s3 + $0x8] sm:$0xf]
      %v675 = vld [vmem:[%s3 + $0xc] sm:$0xf]
      %v676 = vld [vmem:[%s3 + $0x10] sm:$0xf]
      %v677 = vld [vmem:[%s3 + $0x14] sm:$0xf]
      %v678 = vld [vmem:[%s3 + $0x18] sm:$0xf]
      %v679 = vld [vmem:[%s3 + $0x1c] sm:$0xf]
      %v680 = vld [vmem:[%s3 + $0x20] sm:$0xf]
      %v681 = vld [vmem:[%s3 + $0x24] sm:$0xf]
      %v682 = vld [vmem:[%s3 + $0x28] sm:$0xf]
      %v683 = vld [vmem:[%s3 + $0x2c] sm:$0xf]
      %v684 = vld [vmem:[%s3 + $0x30] sm:$0xf]
      %v685 = vld [vmem:[%s3 + $0x34] sm:$0xf]
      %v686 = vld [vmem:[%s3 + $0x38] sm:$0xf]
      %v687 = vld [vmem:[%s3 + $0x3c] sm:$0xf]
      %v688 = vld [vmem:[%s4] sm:$0x1]
      %v690 = vlaneseq
      %v691 = vshrl.u32 %v690, 7
      %v692 = vsub.s32 0, %v691
      %v693 = vrot.slane %v688, %v692
      %v711 = vunpack.c.l.b16 %v672
      %v712 = vunpack.c.l.b16 %v673
      %v713 = vunpack.c.l.b16 %v674
      %v714 = vunpack.c.l.b16 %v675
      %v715 = vunpack.c.l.b16 %v676
      %v716 = vunpack.c.l.b16 %v677
      %v717 = vunpack.c.l.b16 %v678
      %v718 = vunpack.c.l.b16 %v679
      %v719 = vunpack.c.l.b16 %v680
      %v720 = vunpack.c.l.b16 %v681
      %v721 = vunpack.c.l.b16 %v682
      %v722 = vunpack.c.l.b16 %v683
      %v723 = vunpack.c.l.b16 %v684
      %v724 = vunpack.c.l.b16 %v685
      %v725 = vunpack.c.l.b16 %v686
      %v726 = vunpack.c.l.b16 %v687
      %v727 = vpack.c.b16 %v712, %v711
      %v728 = vpack.c.b16 %v714, %v713
      %v729 = vpack.c.b16 %v716, %v715
      %v730 = vpack.c.b16 %v718, %v717
      %v731 = vpack.c.b16 %v720, %v719
      %v732 = vpack.c.b16 %v722, %v721
      %v733 = vpack.c.b16 %v724, %v723
      %v734 = vpack.c.b16 %v726, %v725
      %743 = vmatprep.subr.bf16.mxu0 0
      %744 = vmatpush1.bf16.msra.mxu0 %v734
      %745 = vmatprep.subr.bf16.mxu0 0
      %746 = vmatpush1.bf16.msra.mxu0 %v733
      %747 = vmatprep.subr.bf16.mxu0 0
      %748 = vmatpush1.bf16.msra.mxu0 %v732
      %749 = vmatprep.subr.bf16.mxu0 0
      %750 = vmatpush1.bf16.msra.mxu0 %v731
      %751 = vmatprep.subr.bf16.mxu0 0
      %752 = vmatpush1.bf16.msra.mxu0 %v730
      %753 = vmatprep.subr.bf16.mxu0 0
      %754 = vmatpush1.bf16.msra.mxu0 %v729
      %755 = vmatprep.subr.bf16.mxu0 0
      %756 = vmatpush1.bf16.msra.mxu0 %v728
      %757 = vmatprep.subr.bf16.mxu0 0
      %758 = vmatpush1.bf16.msra.mxu0 %v727
      %759 = vmatprep.subr.bf16.mxu0 0
      %760 = vmatpush2.bf16.msra.mxu0 0
      %761 = vmatprep.subr.bf16.mxu0 0
      %762 = vmatpush2.bf16.msra.mxu0 0
      %763 = vmatprep.subr.bf16.mxu0 0
      %764 = vmatpush2.bf16.msra.mxu0 0
      %765 = vmatprep.subr.bf16.mxu0 0
      %766 = vmatpush2.bf16.msra.mxu0 0
      %767 = vmatprep.subr.bf16.mxu0 0
      %768 = vmatpush2.bf16.msra.mxu0 0
      %769 = vmatprep.subr.bf16.mxu0 0
      %770 = vmatpush2.bf16.msra.mxu0 0
      %771 = vmatprep.subr.bf16.mxu0 0
      %772 = vmatpush2.bf16.msra.mxu0 0
      %773 = vmatprep.subr.bf16.mxu0 0
      %774 = vmatpush2.bf16.msra.mxu0 0
      %775 = vmatprep.mubr.bf16.mxu0 0
      %776 = vmatmul.mubr.bf16.gmra.mxu0 %v671
      %v777 = vpop.f32.mrf.mxu0
      %v778 = vadd.f32 %v693, %v777
      %v779 = vpop.f32.mrf.mxu0
      %v780 = vpop.f32.mrf.mxu0
      %v781 = vpop.f32.mrf.mxu0
      %782 = vdwg.mxu0
      %v783 = vsub.f32 0.0, %v778
      %v784 = vmul.f32 %v783, 1.442695
      %v785 = vpow.pop %v784
      %v786 = vadd.f32 %v785, 1.0
      %v787 = vrcp.pop %v786
      %v788 = vmul.f32 1.0, %v787
      %789 = vst [vmem:[%s227] sm:$0xff] %v788
      %p790 = scmp.lt.s32.totalorder %s16, 1
      %s791 = scalar_select %p790, %s16, 1
      %s792 = smul.addr %s791, 8
      %s793 = scalar_lea.vmem %s5, %s792
      // Predicated region
      $region48: #{classifier_forward.1} parent=39 // pred_check
        %p794 = pneg %p144
      $region49: #{classifier_forward.1} parent=39 // pred_check_branch
        %796 = sbr.rel (%p794) target = $region51
      $region50: #{classifier_forward.1} parent=39 // pred_region
        _
      $region51: #{classifier_forward.1} parent=39 // pred_fallthru
        _
    $region40: #{classifier_forward.1} parent=5 // pred_fallthru
      _
    %p797 = scmp.le.s32.totalorder 2, %s11
    // Predicated region
    $region52: #{classifier_forward.1} parent=5 // pred_check
      %p798 = pneg %p797
    $region53: #{classifier_forward.1} parent=5 // pred_check_branch
      %800 = sbr.rel (%p798) target = $region55
    $region54: #{classifier_forward.1} parent=5 // pred_region
      %s801 = ssub.s32 %s11, 2
      // Predicated region
      $region56: #{classifier_forward.1} parent=54 // pred_check
        %p802 = pneg %p150
      $region57: #{classifier_forward.1} parent=54 // pred_check_branch
        %804 = sbr.rel (%p802) target = $region59
      $region58: #{classifier_forward.1} parent=54 // pred_region
        %p805 = scmp.lt.s32.totalorder %s17, 1
        %s806 = scalar_select %p805, %s17, 1
        %s807 = smul.addr %s806, 8
        %s808 = scalar_lea.vmem %s5, %s807
      $region59: #{classifier_forward.1} parent=54 // pred_fallthru
        _
    $region55: #{classifier_forward.1} parent=5 // pred_fallthru
      _
  $region6: #{classifier_forward.1} parent=0 // loop_footer
    %s15 = sadd.s32 1, %s11
  $region7: #{classifier_forward.1} parent=0 // loop_footer_branch
    %10 = sbr.rel target = $region3
  $region8: #{classifier_forward.1} parent=0 // loop_exit
    _

</llo_original>
